<compile_context>
chip_gen: v5e
topology: v5e:2x2
jax: 0.10.0
libtpu: 0.0.40
codegen_flags: <defaults>
</compile_context>

<pallas_src>
import functools

import numpy as np
import jax
import jax.numpy as jnp
from jax.experimental import pallas as pl
from jax.experimental.pallas import tpu as pltpu


def _round_up(v, m):
    return (v + m - 1) // m * m


def _cdiv(a, b):
    return (a + b - 1) // b


# --------------------------------------------------------------------------- #
# Kernel
# --------------------------------------------------------------------------- #
def _variational_kernel(x_ref, wlin_ref, blin_ref, wdiag_ref, bdiag_ref,
                        wchol_ref, bchol_ref, sdiag_ref, lin_ref, chol_ref):
    """One batch tile of the fused Variational forward.

    x_ref     : [TN, D_IN]          bf16 activations (batch tile)
    wlin_ref  : [D_IN, LIN_W]       bf16 packed [induc | mean] weights (LIN_W = M*F + T*M)
    blin_ref  : [1, LIN_W]          f32 packed bias
    wdiag_ref : [D_IN, DIAG_W]      bf16 chol_diag weights (DIAG_W = T*M)
    bdiag_ref : [1, DIAG_W]         f32 bias
    wchol_ref : [D_IN, CHOL_W]      bf16 chol_lower weights pre-scattered into the flat
                                    [T*M*M] Cholesky layout (W_lower @ S_lower)
    bchol_ref : [1, CHOL_W]         f32 pre-scattered chol_lower bias
    sdiag_ref : [DIAG_W, CHOL_W]    bf16 0/1 scatter matrix: (t,i) -> t*M*M + i*(M+1)
    lin_ref   : [TN, LIN_W]         bf16 out: [inducing | mean], no lane padding
    chol_ref  : [TN, CHOL_W]        bf16 out: flat [T*M*M] Cholesky factor, no padding
    """
    # saturation = Tanh in f32, then cast to the matmul dtype (bf16) for the MXU.
    xt = jnp.tanh(x_ref[...].astype(jnp.float32)).astype(wlin_ref.dtype)

    # induc_proj / mean_proj in one MXU matmul (f32 accumulation), stored directly.
    lin = jnp.dot(xt, wlin_ref[...], preferred_element_type=jnp.float32) + blin_ref[...]
    lin_ref[...] = lin.astype(lin_ref.dtype)

    # chol_diag_proj + Softplus (beta=1, threshold=20), computed in f32.
    d = jnp.dot(xt, wdiag_ref[...], preferred_element_type=jnp.float32) + bdiag_ref[...]
    sp = jnp.where(d > 20.0, d, jnp.log(1.0 + jnp.exp(jnp.minimum(d, 20.0))))

    # chol_lower_proj, already scattered into the flat [T, M, M] layout by the weight
    # packing; add the softplus'ed diagonal via a constant 0/1 bf16 matmul.
    chol = jnp.dot(xt, wchol_ref[...], preferred_element_type=jnp.float32) + bchol_ref[...]
    chol = chol + jnp.dot(sp.astype(sdiag_ref.dtype), sdiag_ref[...],
                          preferred_element_type=jnp.float32)
    chol_ref[...] = chol.astype(chol_ref.dtype)


# --------------------------------------------------------------------------- #
# Parameter packing (PyTorch convention: weight [out, in], bias [out])
# --------------------------------------------------------------------------- #
def pack_variational_params(params, *, num_tasks, num_inducing, num_features,
                            compute_dtype=jnp.bfloat16):
    T, M, F = num_tasks, num_inducing, num_features
    L = M * (M - 1) // 2
    d_in = params["induc_w"].shape[1]

    lin_w = M * F + T * M          # [inducing | mean] packed contiguously, no padding
    diag_w = T * M
    chol_w = T * M * M

    w_lin = jnp.concatenate([params["induc_w"].T, params["mean_w"].T], axis=1)
    b_lin = jnp.concatenate([params["induc_b"], params["mean_b"]])[None, :]
    w_diag = params["diag_w"].T
    b_diag = params["diag_b"][None, :]

    # Strictly-lower-triangular scatter, same row-major ordering as
    # torch.tril_indices(M, M, offset=-1); folded directly into the weights/bias.
    rows, cols = np.tril_indices(M, k=-1)
    s_lower = np.zeros((T * L, chol_w), dtype=np.float32)
    for t in range(T):
        s_lower[t * L + np.arange(L), t * M * M + rows * M + cols] = 1.0
    s_lower = jnp.asarray(s_lower)
    w_chol = params["lower_w"].T @ s_lower           # zeros land exactly on non-lower slots
    b_chol = params["lower_b"][None, :] @ s_lower

    # Diagonal scatter matrix (applied after Softplus, inside the kernel). 0/1 -> exact bf16.
    s_diag = np.zeros((diag_w, chol_w), dtype=np.float32)
    for t in range(T):
        s_diag[t * M + np.arange(M), t * M * M + np.arange(M) * (M + 1)] = 1.0

    return {
        "w_lin": w_lin.astype(compute_dtype),
        "b_lin": b_lin.astype(jnp.float32),
        "w_diag": w_diag.astype(compute_dtype),
        "b_diag": b_diag.astype(jnp.float32),
        "w_chol": w_chol.astype(compute_dtype),
        "b_chol": b_chol.astype(jnp.float32),
        "s_diag": jnp.asarray(s_diag).astype(compute_dtype),
        "dims": dict(T=T, M=M, F=F, L=L, d_in=d_in,
                     lin_w=lin_w, diag_w=diag_w, chol_w=chol_w),
    }


# --------------------------------------------------------------------------- #
# Forward wrapper
# --------------------------------------------------------------------------- #
def variational_forward(x, packed, *, block_rows=1024, out_dtype=jnp.bfloat16):
    dims = packed["dims"]
    T, M, F = dims["T"], dims["M"], dims["F"]
    d_in = dims["d_in"]
    lin_w, diag_w, chol_w = dims["lin_w"], dims["diag_w"], dims["chol_w"]
    n = x.shape[0]

    # ---- VMEM-budget-derived tile size (chol_w = T*M^2 grows quadratically; on v7x
    #      the physical VMEM is only 64 MiB, so auto-size instead of hardcoding). ----
    try:
        vmem_cap = int(getattr(pltpu.get_tpu_info(), "vmem_capacity_bytes",
                               64 * 1024 * 1024))
    except Exception:
        vmem_cap = 64 * 1024 * 1024
    vmem_limit = min(int(vmem_cap * 0.75), 100 * 1024 * 1024)   # 48 MiB on v7x, 96 MiB on v5e/v6e

    out_b = jnp.dtype(out_dtype).itemsize
    # Resident (constant index_map) params: bf16 weights + f32 biases, assume 2 buffers.
    resident = 2 * (2 * (d_in * (lin_w + diag_w + chol_w) + diag_w * chol_w)
                    + 4 * (lin_w + diag_w + chol_w))
    # Per batch-row: double-buffered bf16 I/O + rough f32 intermediates.
    per_row = (2 * (2 * d_in + out_b * (lin_w + chol_w))
               + 4 * (d_in + lin_w + 2 * diag_w + chol_w))
    budget = int(vmem_limit * 0.6) - resident
    tn_cap = max(16, min(2048, (budget // max(per_row, 1)) // 16 * 16))

    # ---- Balanced tiling: padding < 16 rows instead of up to tn-1. ----
    tn_target = max(16, min(block_rows, tn_cap))
    tiles = max(1, _cdiv(n, tn_target))
    tn = _round_up(_cdiv(n, tiles), 16)
    n_pad = tn * tiles

    xb = x.astype(jnp.bfloat16)                       # halve activation HBM read
    if n_pad != n:
        xb = jnp.pad(xb, ((0, n_pad - n), (0, 0)))

    out_lin, out_chol = pl.pallas_call(
        _variational_kernel,
        out_shape=(
            jax.ShapeDtypeStruct((n_pad, lin_w), out_dtype),
            jax.ShapeDtypeStruct((n_pad, chol_w), out_dtype),
        ),
        grid=(tiles,),
        in_specs=[
            pl.BlockSpec((tn, d_in), lambda i: (i, 0)),          # x: tiled over batch
            pl.BlockSpec((d_in, lin_w), lambda i: (0, 0)),       # params VMEM-resident
            pl.BlockSpec((1, lin_w), lambda i: (0, 0)),
            pl.BlockSpec((d_in, diag_w), lambda i: (0, 0)),
            pl.BlockSpec((1, diag_w), lambda i: (0, 0)),
            pl.BlockSpec((d_in, chol_w), lambda i: (0, 0)),
            pl.BlockSpec((1, chol_w), lambda i: (0, 0)),
            pl.BlockSpec((diag_w, chol_w), lambda i: (0, 0)),
        ],
        out_specs=(
            pl.BlockSpec((tn, lin_w), lambda i: (i, 0)),
            pl.BlockSpec((tn, chol_w), lambda i: (i, 0)),
        ),
        compiler_params=pltpu.CompilerParams(
            dimension_semantics=("parallel",),        # megacore / 2-TC batch split
            vmem_limit_bytes=vmem_limit,
        ),
    )(xb, packed["w_lin"], packed["b_lin"], packed["w_diag"], packed["b_diag"],
      packed["w_chol"], packed["b_chol"], packed["s_diag"])

    # Glue: slice the dense slabs back to the module's output conventions.
    inducing = out_lin[:n, :M * F].reshape(n, M, F)
    mean = out_lin[:n, M * F:].reshape(n, T, M).transpose(1, 0, 2)
    chol = out_chol[:n].reshape(n, T, M, M).transpose(1, 0, 2, 3)
    return inducing, mean, chol


# --------------------------------------------------------------------------- #
# Pure-JAX f32 reference (mirrors the PyTorch module)
# --------------------------------------------------------------------------- #
def _reference_forward(x, params, *, num_tasks, num_inducing, num_features):
    T, M, F = num_tasks, num_inducing, num_features
    L = M * (M - 1) // 2
    n = x.shape[0]
    xt = jnp.tanh(x)
    induc = (xt @ params["induc_w"].T + params["induc_b"]).reshape(n, M, F)
    mean = (xt @ params["mean_w"].T + params["mean_b"]).reshape(n, T, M)
    diag = (xt @ params["diag_w"].T + params["diag_b"]).reshape(n, T, M)
    lower = (xt @ params["lower_w"].T + params["lower_b"]).reshape(n, T, L)
    diag = jnp.where(diag > 20.0, diag, jnp.log(1.0 + jnp.exp(jnp.minimum(diag, 20.0))))
    rows, cols = np.tril_indices(M, k=-1)
    chol = jnp.zeros((n, T, M, M), jnp.float32)
    chol = chol.at[:, :, np.arange(M), np.arange(M)].set(diag)
    chol = chol.at[:, :, rows, cols].set(lower)
    return induc, mean.transpose(1, 0, 2), chol.transpose(1, 0, 2, 3)


if __name__ == "__main__":
    N, D_IN = 8, 32          # batch, in_features
    T, M, F = 3, 8, 16       # num_tasks, num_inducing, num_features
    L = M * (M - 1) // 2

    key = jax.random.PRNGKey(0)
    ks = jax.random.split(key, 9)
    x = jax.random.normal(ks[0], (N, D_IN), dtype=jnp.float32)

    def xavier_normal(k, fan_out, fan_in):
        std = (2.0 / (fan_in + fan_out)) ** 0.5
        return std * jax.random.normal(k, (fan_out, fan_in), dtype=jnp.float32)

    params = {
        "induc_w": xavier_normal(ks[1], M * F, D_IN),
        "induc_b": 0.1 * jax.random.normal(ks[2], (M * F,), dtype=jnp.float32),
        "mean_w": xavier_normal(ks[3], T * M, D_IN),
        "mean_b": 0.1 * jax.random.normal(ks[4], (T * M,), dtype=jnp.float32),
        "diag_w": xavier_normal(ks[5], T * M, D_IN),
        "diag_b": 0.1 * jax.random.normal(ks[6], (T * M,), dtype=jnp.float32),
        "lower_w": xavier_normal(ks[7], T * L, D_IN),
        "lower_b": 0.1 * jax.random.normal(ks[8], (T * L,), dtype=jnp.float32),
    }

    packed = pack_variational_params(
        params, num_tasks=T, num_inducing=M, num_features=F,
        compute_dtype=jnp.bfloat16)   # bf16 weights/activations, f32 accumulation

    inducing, mean, chol = jax.block_until_ready(variational_forward(x, packed))

    assert inducing.shape == (N, M, F)
    assert mean.shape == (T, N, M)
    assert chol.shape == (T, N, M, M)

    # structural checks: positive (softplus'ed) diagonal, exactly-zero strict upper
    di = np.arange(M)
    assert bool(jnp.all(chol[:, :, di, di] > 0))
    iu = np.triu_indices(M, k=1)
    assert bool(jnp.all(chol[:, :, iu[0], iu[1]] == 0))

    # numerical check against a pure-JAX f32 reference (tolerance sized for the
    # bf16 MXU path + bf16 activation/output casts)
    r_ind, r_mean, r_chol = _reference_forward(
        x, params, num_tasks=T, num_inducing=M, num_features=F)
    for got, ref in ((inducing, r_ind), (mean, r_mean), (chol, r_chol)):
        err = float(jnp.max(jnp.abs(got.astype(jnp.float32) - ref)))
        assert err < 4e-2, f"max abs err {err}"

    print("KERNEL_OK")
</pallas_src>

<mosaic_0001>
module attributes {stable_mosaic.version = 11 : i64} {
  func.func @_variational_kernel(%arg0: i32, %arg1: memref<16x32xbf16, #tpu.memory_space<vmem>>, %arg2: memref<32x152xbf16, #tpu.memory_space<vmem>>, %arg3: memref<1x152xf32, #tpu.memory_space<vmem>>, %arg4: memref<32x24xbf16, #tpu.memory_space<vmem>>, %arg5: memref<1x24xf32, #tpu.memory_space<vmem>>, %arg6: memref<32x192xbf16, #tpu.memory_space<vmem>>, %arg7: memref<1x192xf32, #tpu.memory_space<vmem>>, %arg8: memref<24x192xbf16, #tpu.memory_space<vmem>>, %arg9: memref<16x152xbf16, #tpu.memory_space<vmem>>, %arg10: memref<16x192xbf16, #tpu.memory_space<vmem>>) attributes {dimension_semantics = [#tpu.dimension_semantics<parallel>], iteration_bounds = array<i64: 1>, scalar_prefetch = 0 : i64, scratch_operands = 0 : i64, tpu.core_type = #tpu.core_type<tc>, window_params = [{transform_indices = @transform_0, window_bounds = array<i64: 16, 32>}, {pipeline_mode = #tpu.pipeline_mode<synchronous>, transform_indices = @transform_1, window_bounds = array<i64: 32, 152>}, {pipeline_mode = #tpu.pipeline_mode<synchronous>, transform_indices = @transform_2, window_bounds = array<i64: 1, 152>}, {pipeline_mode = #tpu.pipeline_mode<synchronous>, transform_indices = @transform_3, window_bounds = array<i64: 32, 24>}, {pipeline_mode = #tpu.pipeline_mode<synchronous>, transform_indices = @transform_4, window_bounds = array<i64: 1, 24>}, {pipeline_mode = #tpu.pipeline_mode<synchronous>, transform_indices = @transform_5, window_bounds = array<i64: 32, 192>}, {pipeline_mode = #tpu.pipeline_mode<synchronous>, transform_indices = @transform_6, window_bounds = array<i64: 1, 192>}, {pipeline_mode = #tpu.pipeline_mode<synchronous>, transform_indices = @transform_7, window_bounds = array<i64: 24, 192>}, {transform_indices = @transform_8, window_bounds = array<i64: 16, 152>}, {transform_indices = @transform_9, window_bounds = array<i64: 16, 192>}]} {
    %c0 = arith.constant 0 : index
    %c0_0 = arith.constant 0 : index
    %0 = vector.load %arg1[%c0, %c0_0] : memref<16x32xbf16, #tpu.memory_space<vmem>>, vector<16x32xbf16>
    %1 = arith.extf %0 : vector<16x32xbf16> to vector<16x32xf32>
    %2 = math.tanh %1 : vector<16x32xf32>
    %3 = arith.truncf %2 : vector<16x32xf32> to vector<16x32xbf16>
    %c0_1 = arith.constant 0 : index
    %c0_2 = arith.constant 0 : index
    %4 = vector.load %arg2[%c0_1, %c0_2] : memref<32x152xbf16, #tpu.memory_space<vmem>>, vector<32x152xbf16>
    %cst = arith.constant dense<0.000000e+00> : vector<16x152xf32>
    %5 = tpu.matmul %3, %4, %cst {dimension_numbers = #tpu.dot_dimension_numbers<[1], [0], [0], [1], [0, 0, 1, 1], [], []>} : vector<16x32xbf16>, vector<32x152xbf16>, vector<16x152xf32> -> vector<16x152xf32>
    %c0_3 = arith.constant 0 : index
    %c0_4 = arith.constant 0 : index
    %6 = vector.load %arg3[%c0_3, %c0_4] : memref<1x152xf32, #tpu.memory_space<vmem>>, vector<1x152xf32>
    %7 = vector.broadcast %6 : vector<1x152xf32> to vector<16x152xf32>
    %8 = arith.addf %5, %7 : vector<16x152xf32>
    %9 = arith.truncf %8 : vector<16x152xf32> to vector<16x152xbf16>
    %c0_5 = arith.constant 0 : index
    %c0_6 = arith.constant 0 : index
    %10 = vector.load %arg9[%c0_5, %c0_6] : memref<16x152xbf16, #tpu.memory_space<vmem>>, vector<16x152xbf16>
    tpu.vector_store %arg9[%c0_5, %c0_6], %9 {strides = array<i32>} : memref<16x152xbf16, #tpu.memory_space<vmem>>, vector<16x152xbf16>,
    %c0_7 = arith.constant 0 : index
    %c0_8 = arith.constant 0 : index
    %11 = vector.load %arg4[%c0_7, %c0_8] : memref<32x24xbf16, #tpu.memory_space<vmem>>, vector<32x24xbf16>
    %cst_9 = arith.constant dense<0.000000e+00> : vector<16x24xf32>
    %12 = tpu.matmul %3, %11, %cst_9 {dimension_numbers = #tpu.dot_dimension_numbers<[1], [0], [0], [1], [0, 0, 1, 1], [], []>} : vector<16x32xbf16>, vector<32x24xbf16>, vector<16x24xf32> -> vector<16x24xf32>
    %c0_10 = arith.constant 0 : index
    %c0_11 = arith.constant 0 : index
    %13 = vector.load %arg5[%c0_10, %c0_11] : memref<1x24xf32, #tpu.memory_space<vmem>>, vector<1x24xf32>
    %14 = vector.broadcast %13 : vector<1x24xf32> to vector<16x24xf32>
    %15 = arith.addf %12, %14 : vector<16x24xf32>
    %cst_12 = arith.constant 2.000000e+01 : f32
    %16 = vector.broadcast %cst_12 : f32 to vector<16x24xf32>
    %17 = arith.cmpf ogt, %15, %16 : vector<16x24xf32>
    %cst_13 = arith.constant 2.000000e+01 : f32
    %18 = vector.broadcast %cst_13 : f32 to vector<16x24xf32>
    %19 = arith.minimumf %15, %18 : vector<16x24xf32>
    %20 = math.exp %19 : vector<16x24xf32>
    %cst_14 = arith.constant 1.000000e+00 : f32
    %21 = vector.broadcast %cst_14 : f32 to vector<16x24xf32>
    %22 = arith.addf %21, %20 : vector<16x24xf32>
    %23 = math.log %22 : vector<16x24xf32>
    %24 = arith.select %17, %15, %23 : vector<16x24xi1>, vector<16x24xf32>
    %c0_15 = arith.constant 0 : index
    %c0_16 = arith.constant 0 : index
    %25 = vector.load %arg6[%c0_15, %c0_16] : memref<32x192xbf16, #tpu.memory_space<vmem>>, vector<32x192xbf16>
    %cst_17 = arith.constant dense<0.000000e+00> : vector<16x192xf32>
    %26 = tpu.matmul %3, %25, %cst_17 {dimension_numbers = #tpu.dot_dimension_numbers<[1], [0], [0], [1], [0, 0, 1, 1], [], []>} : vector<16x32xbf16>, vector<32x192xbf16>, vector<16x192xf32> -> vector<16x192xf32>
    %c0_18 = arith.constant 0 : index
    %c0_19 = arith.constant 0 : index
    %27 = vector.load %arg7[%c0_18, %c0_19] : memref<1x192xf32, #tpu.memory_space<vmem>>, vector<1x192xf32>
    %28 = vector.broadcast %27 : vector<1x192xf32> to vector<16x192xf32>
    %29 = arith.addf %26, %28 : vector<16x192xf32>
    %30 = arith.truncf %24 : vector<16x24xf32> to vector<16x24xbf16>
    %c0_20 = arith.constant 0 : index
    %c0_21 = arith.constant 0 : index
    %31 = vector.load %arg8[%c0_20, %c0_21] : memref<24x192xbf16, #tpu.memory_space<vmem>>, vector<24x192xbf16>
    %cst_22 = arith.constant dense<0.000000e+00> : vector<16x192xf32>
    %32 = tpu.matmul %30, %31, %cst_22 {dimension_numbers = #tpu.dot_dimension_numbers<[1], [0], [0], [1], [0, 0, 1, 1], [], []>} : vector<16x24xbf16>, vector<24x192xbf16>, vector<16x192xf32> -> vector<16x192xf32>
    %33 = arith.addf %29, %32 : vector<16x192xf32>
    %34 = arith.truncf %33 : vector<16x192xf32> to vector<16x192xbf16>
    %c0_23 = arith.constant 0 : index
    %c0_24 = arith.constant 0 : index
    %35 = vector.load %arg10[%c0_23, %c0_24] : memref<16x192xbf16, #tpu.memory_space<vmem>>, vector<16x192xbf16>
    tpu.vector_store %arg10[%c0_23, %c0_24], %34 {strides = array<i32>} : memref<16x192xbf16, #tpu.memory_space<vmem>>, vector<16x192xbf16>,
    return
  }
  func.func @transform_0(%arg0: i32) -> (i32, i32) {
    %c0_i32 = arith.constant 0 : i32
    %c0_i32_0 = arith.constant 0 : i32
    return %arg0, %c0_i32 : i32, i32
  }
  func.func @transform_1(%arg0: i32) -> (i32, i32) {
    %c0_i32 = arith.constant 0 : i32
    %c0_i32_0 = arith.constant 0 : i32
    %c0_i32_1 = arith.constant 0 : i32
    return %c0_i32, %c0_i32_0 : i32, i32
  }
  func.func @transform_2(%arg0: i32) -> (i32, i32) {
    %c0_i32 = arith.constant 0 : i32
    %c0_i32_0 = arith.constant 0 : i32
    %c0_i32_1 = arith.constant 0 : i32
    return %c0_i32, %c0_i32_0 : i32, i32
  }
  func.func @transform_3(%arg0: i32) -> (i32, i32) {
    %c0_i32 = arith.constant 0 : i32
    %c0_i32_0 = arith.constant 0 : i32
    %c0_i32_1 = arith.constant 0 : i32
    return %c0_i32, %c0_i32_0 : i32, i32
  }
  func.func @transform_4(%arg0: i32) -> (i32, i32) {
    %c0_i32 = arith.constant 0 : i32
    %c0_i32_0 = arith.constant 0 : i32
    %c0_i32_1 = arith.constant 0 : i32
    return %c0_i32, %c0_i32_0 : i32, i32
  }
  func.func @transform_5(%arg0: i32) -> (i32, i32) {
    %c0_i32 = arith.constant 0 : i32
    %c0_i32_0 = arith.constant 0 : i32
    %c0_i32_1 = arith.constant 0 : i32
    return %c0_i32, %c0_i32_0 : i32, i32
  }
  func.func @transform_6(%arg0: i32) -> (i32, i32) {
    %c0_i32 = arith.constant 0 : i32
    %c0_i32_0 = arith.constant 0 : i32
    %c0_i32_1 = arith.constant 0 : i32
    return %c0_i32, %c0_i32_0 : i32, i32
  }
  func.func @transform_7(%arg0: i32) -> (i32, i32) {
    %c0_i32 = arith.constant 0 : i32
    %c0_i32_0 = arith.constant 0 : i32
    %c0_i32_1 = arith.constant 0 : i32
    return %c0_i32, %c0_i32_0 : i32, i32
  }
  func.func @transform_8(%arg0: i32) -> (i32, i32) {
    %c0_i32 = arith.constant 0 : i32
    %c0_i32_0 = arith.constant 0 : i32
    return %arg0, %c0_i32 : i32, i32
  }
  func.func @transform_9(%arg0: i32) -> (i32, i32) {
    %c0_i32 = arith.constant 0 : i32
    %c0_i32_0 = arith.constant 0 : i32
    return %arg0, %c0_i32 : i32, i32
  }
}

</mosaic_0001>

<llo_original>
// kernel: tpu_custom_call.1
$region0: #{tpu_custom_call.1}
  #allocation0 [shape = 'u32[]', space=smem, size = 0x4, offset = 0x4, fixed_abs, tag = 'smem constant byte address 0x4 - core index']
  #allocation1 [shape = 'u32[72,128]{1,0:T(1,128)}', space=vmem, size = 0x9000, scoped, tag = 'internal scratch']
  %s0 = inlined_call_operand.hbm [shape: bf16[16,32], index: 0, kind: input, shape index: {}]
  %s1 = inlined_call_operand.hbm [shape: bf16[32,152], index: 1, kind: input, shape index: {}]
  %s2 = inlined_call_operand.hbm [shape: f32[1,152], index: 2, kind: input, shape index: {}]
  %s3 = inlined_call_operand.vmem [shape: bf16[32,24], index: 3, kind: input, shape index: {}]
  %s4 = inlined_call_operand.hbm [shape: f32[1,24], index: 4, kind: input, shape index: {}]
  %s5 = inlined_call_operand.vmem [shape: bf16[32,192], index: 5, kind: input, shape index: {}]
  %s6 = inlined_call_operand.hbm [shape: f32[1,192], index: 6, kind: input, shape index: {}]
  %s7 = inlined_call_operand.hbm [shape: bf16[24,192], index: 7, kind: input, shape index: {}]
  %s8 = inlined_call_operand.hbm [shape: bf16[16,152], index: 8, kind: output, shape index: {0}]
  %s9 = inlined_call_operand.hbm [shape: bf16[16,192], index: 9, kind: output, shape index: {1}]
  %10 = xla_tuple %s8, %s9
  %s11 = sld [smem:[#allocation0]]
  $region74: #{tpu_custom_call.1} parent=0
    _
  %s13 = ssub.s32 1, %s11
  %s14 = scalar_select 0, %s13, %s11
  $region1: #{tpu_custom_call.1} parent=0
    #allocation2 [shape = 'u8[4096]{0}', space=vmem, size = 0x1000, scoped, tag = 'input window, operand 0, single buffered']
    #allocation3 [shape = 's32[1]{0}', space=sflag, size = 0x4, scoped, tag = 'scoped memory for tpu_custom_call.1']
    #allocation4 [shape = 's32[1]{0}', space=sflag, size = 0x4, scoped, tag = 'scoped memory for tpu_custom_call.1']
    #allocation5 [shape = 'u8[16384]{0}', space=vmem, size = 0x4000, scoped, tag = 'input window, operand 1, single buffered']
    #allocation6 [shape = 's32[1]{0}', space=sflag, size = 0x4, scoped, tag = 'scoped memory for tpu_custom_call.1']
    #allocation7 [shape = 'u8[1024]{0}', space=vmem, size = 0x400, scoped, tag = 'input window, operand 2, single buffered']
    #allocation8 [shape = 'u8[512]{0}', space=vmem, size = 0x400, scoped, tag = 'input window, operand 4, single buffered']
    #allocation9 [shape = 's32[1]{0}', space=sflag, size = 0x4, scoped, tag = 'scoped memory for tpu_custom_call.1']
    #allocation10 [shape = 'u8[1024]{0}', space=vmem, size = 0x400, scoped, tag = 'input window, operand 6, single buffered']
    #allocation11 [shape = 'u8[12288]{0}', space=vmem, size = 0x3000, scoped, tag = 'input window, operand 7, single buffered']
    #allocation12 [shape = 's32[1]{0}', space=sflag, size = 0x4, scoped, tag = 'scoped memory for tpu_custom_call.1']
    #allocation13 [shape = 'u8[8192]{0}', space=vmem, size = 0x2000, scoped, tag = 'output window, operand 0, single buffered']
    #allocation14 [shape = 'u8[8192]{0}', space=vmem, size = 0x2000, scoped, tag = 'output window, operand 1, single buffered']
    #allocation15 [shape = 's32[1]{0}', space=sflag, size = 0x4, scoped, tag = 'scoped memory for tpu_custom_call.1']
    %15 = vsyncpa [#allocation3], 0
    %16 = vsyncpa [#allocation6], 0
    %17 = vsyncpa [#allocation9], 0
    %18 = vsyncpa [#allocation12], 0
    %19 = vsyncpa [#allocation4], 0
    %20 = vsyncpa [#allocation15], 0
    // Predicated region
    $region2: #{tpu_custom_call.1} parent=1 // pred_check
      _
    $region3: #{tpu_custom_call.1} parent=1 // pred_check_branch
      %22 = sbr.rel (0) target = $region5
    $region4: #{tpu_custom_call.1} parent=1 // pred_region
      %24 = vsyncadd [#allocation3], 0
      %s25 = sshll.u32 %s0, 4
      %s26 = int_to_ptr.hbm [resolvable:$true] %s25
      %s27 = sshll.u32 [#allocation2], 4
      %s28 = int_to_ptr.vmem [resolvable:$true] %s27
      %33 = dma.hbm_to_vmem [thread:$0]  %s26, 128, %s28, [#allocation3], 64, 64, 4
    $region5: #{tpu_custom_call.1} parent=1 // pred_fallthru
      _
    // Predicated region
    $region6: #{tpu_custom_call.1} parent=1 // pred_check
      _
    $region7: #{tpu_custom_call.1} parent=1 // pred_check_branch
      %35 = sbr.rel (0) target = $region9
    $region8: #{tpu_custom_call.1} parent=1 // pred_region
      %37 = vsyncadd [#allocation6], 0
      %s38 = sshll.u32 %s1, 4
      %s39 = int_to_ptr.hbm [resolvable:$true] %s38
      %s40 = sshll.u32 [#allocation5], 4
      %s41 = int_to_ptr.vmem [resolvable:$true] %s40
      %46 = dma.hbm_to_vmem [thread:$0]  %s39, 512, %s41, [#allocation6], 128, 128, 8
    $region9: #{tpu_custom_call.1} parent=1 // pred_fallthru
      _
    // Predicated region
    $region10: #{tpu_custom_call.1} parent=1 // pred_check
      _
    $region11: #{tpu_custom_call.1} parent=1 // pred_check_branch
      %48 = sbr.rel (0) target = $region13
    $region12: #{tpu_custom_call.1} parent=1 // pred_region
      %50 = vsyncadd [#allocation6], 0
      %s52 = sshll.u32 %s2, 4
      %s53 = int_to_ptr.hbm [resolvable:$true] %s52
      %s54 = sshll.u32 [#allocation7], 4
      %s55 = int_to_ptr.vmem [resolvable:$true] %s54
      %57 = dma.hbm_to_vmem [thread:$0]  %s53, 32, %s55, [#allocation6]
    $region13: #{tpu_custom_call.1} parent=1 // pred_fallthru
      _
    // Predicated region
    $region14: #{tpu_custom_call.1} parent=1 // pred_check
      _
    $region15: #{tpu_custom_call.1} parent=1 // pred_check_branch
      %59 = sbr.rel (0) target = $region17
    $region16: #{tpu_custom_call.1} parent=1 // pred_region
      _
    $region17: #{tpu_custom_call.1} parent=1 // pred_fallthru
      _
    // Predicated region
    $region18: #{tpu_custom_call.1} parent=1 // pred_check
      _
    $region19: #{tpu_custom_call.1} parent=1 // pred_check_branch
      %61 = sbr.rel (0) target = $region21
    $region20: #{tpu_custom_call.1} parent=1 // pred_region
      %63 = vsyncadd [#allocation9], 0
      %s65 = sshll.u32 %s4, 4
      %s66 = int_to_ptr.hbm [resolvable:$true] %s65
      %s67 = sshll.u32 [#allocation8], 4
      %s68 = int_to_ptr.vmem [resolvable:$true] %s67
      %70 = dma.hbm_to_vmem [thread:$0]  %s66, 16, %s68, [#allocation9]
    $region21: #{tpu_custom_call.1} parent=1 // pred_fallthru
      _
    // Predicated region
    $region22: #{tpu_custom_call.1} parent=1 // pred_check
      _
    $region23: #{tpu_custom_call.1} parent=1 // pred_check_branch
      %72 = sbr.rel (0) target = $region25
    $region24: #{tpu_custom_call.1} parent=1 // pred_region
      _
    $region25: #{tpu_custom_call.1} parent=1 // pred_fallthru
      _
    // Predicated region
    $region26: #{tpu_custom_call.1} parent=1 // pred_check
      _
    $region27: #{tpu_custom_call.1} parent=1 // pred_check_branch
      %74 = sbr.rel (0) target = $region29
    $region28: #{tpu_custom_call.1} parent=1 // pred_region
      %76 = vsyncadd [#allocation9], 0
      %s78 = sshll.u32 %s6, 4
      %s79 = int_to_ptr.hbm [resolvable:$true] %s78
      %s80 = sshll.u32 [#allocation10], 4
      %s81 = int_to_ptr.vmem [resolvable:$true] %s80
      %83 = dma.hbm_to_vmem [thread:$0]  %s79, 32, %s81, [#allocation9]
    $region29: #{tpu_custom_call.1} parent=1 // pred_fallthru
      _
    // Predicated region
    $region30: #{tpu_custom_call.1} parent=1 // pred_check
      _
    $region31: #{tpu_custom_call.1} parent=1 // pred_check_branch
      %85 = sbr.rel (0) target = $region33
    $region32: #{tpu_custom_call.1} parent=1 // pred_region
      %87 = vsyncadd [#allocation12], 0
      %s88 = sshll.u32 %s7, 4
      %s89 = int_to_ptr.hbm [resolvable:$true] %s88
      %s90 = sshll.u32 [#allocation11], 4
      %s91 = int_to_ptr.vmem [resolvable:$true] %s90
      %96 = dma.hbm_to_vmem [thread:$0]  %s89, 384, %s91, [#allocation12], 128, 128, 8
    $region33: #{tpu_custom_call.1} parent=1 // pred_fallthru
      _
    // Predicated region
    $region34: #{tpu_custom_call.1} parent=1 // pred_check
      _
    $region35: #{tpu_custom_call.1} parent=1 // pred_check_branch
      %98 = sbr.rel (0) target = $region37
    $region36: #{tpu_custom_call.1} parent=1 // pred_region
      %100 = dma.done [#allocation3], 128
    $region37: #{tpu_custom_call.1} parent=1 // pred_fallthru
      _
    // Predicated region
    $region38: #{tpu_custom_call.1} parent=1 // pred_check
      _
    $region39: #{tpu_custom_call.1} parent=1 // pred_check_branch
      %102 = sbr.rel (0) target = $region41
    $region40: #{tpu_custom_call.1} parent=1 // pred_region
      %104 = dma.done [#allocation6], 512
    $region41: #{tpu_custom_call.1} parent=1 // pred_fallthru
      _
    // Predicated region
    $region42: #{tpu_custom_call.1} parent=1 // pred_check
      _
    $region43: #{tpu_custom_call.1} parent=1 // pred_check_branch
      %106 = sbr.rel (0) target = $region45
    $region44: #{tpu_custom_call.1} parent=1 // pred_region
      %108 = dma.done [#allocation6], 32
    $region45: #{tpu_custom_call.1} parent=1 // pred_fallthru
      _
    // Predicated region
    $region46: #{tpu_custom_call.1} parent=1 // pred_check
      _
    $region47: #{tpu_custom_call.1} parent=1 // pred_check_branch
      %110 = sbr.rel (0) target = $region49
    $region48: #{tpu_custom_call.1} parent=1 // pred_region
      %112 = dma.done [#allocation9], 16
    $region49: #{tpu_custom_call.1} parent=1 // pred_fallthru
      _
    // Predicated region
    $region50: #{tpu_custom_call.1} parent=1 // pred_check
      _
    $region51: #{tpu_custom_call.1} parent=1 // pred_check_branch
      %114 = sbr.rel (0) target = $region53
    $region52: #{tpu_custom_call.1} parent=1 // pred_region
      %116 = dma.done [#allocation9], 32
    $region53: #{tpu_custom_call.1} parent=1 // pred_fallthru
      _
    // Predicated region
    $region54: #{tpu_custom_call.1} parent=1 // pred_check
      _
    $region55: #{tpu_custom_call.1} parent=1 // pred_check_branch
      %118 = sbr.rel (0) target = $region57
    $region56: #{tpu_custom_call.1} parent=1 // pred_region
      %120 = dma.done [#allocation12], 384
    $region57: #{tpu_custom_call.1} parent=1 // pred_fallthru
      _
    %v122 = vld [vmem:[#allocation2] sm:$0xf]
    %v123 = vld [vmem:[#allocation2 + $0x4] sm:$0xf]
    %v124 = vunpack.c.l.bf16 %v122
    %v125 = vunpack.c.l.bf16 %v123
    %v126 = vtanh.pop %v124
    %v127 = vtanh.pop %v125
    %v128 = vpack.c.bf16 %v127, %v126
    %v129 = vld [vmem:[#allocation5] sm:$0xff]
    %v130 = vld [vmem:[#allocation5 + $0x8] sm:$0xff]
    %v131 = vld [vmem:[#allocation5 + $0x10] sm:$0xff]
    %v132 = vld [vmem:[#allocation5 + $0x18] sm:$0xff]
    %v133 = vld [vmem:[#allocation7] sm:$0x3]
    %v135 = vperm.slane %v133, 0
    %v136 = vperm.slane %v133, 1
    %v143 = vunpack.c.l.b16 %v129
    %v144 = vunpack.c.h.b16 %v129
    %v145 = vunpack.c.l.b16 %v130
    %v146 = vunpack.c.h.b16 %v130
    %v147 = vunpack.c.l.b16 %v131
    %v148 = vunpack.c.h.b16 %v131
    %v149 = vunpack.c.l.b16 %v132
    %v150 = vunpack.c.h.b16 %v132
    %v151 = vpack.c.b16 %v145, %v143
    %v152 = vpack.c.b16 %v146, %v144
    %v153 = vpack.c.b16 %v149, %v147
    %v154 = vpack.c.b16 %v150, %v148
    %vm159 = vcmask 261120
    %v161 = vsel %vm159, %v128, 0
    %163 = vmatpush.bf16.msra.mxu0 0
    %164 = vmatpush.bf16.msra.mxu0 0
    %165 = vmatpush.bf16.msra.mxu0 0
    %166 = vmatpush.bf16.msra.mxu0 0
    %167 = vmatpush.bf16.msra.mxu0 0
    %168 = vmatpush.bf16.msra.mxu0 0
    %169 = vmatpush.bf16.msra.mxu0 %v153
    %170 = vmatpush.bf16.msra.mxu0 %v151
    %171 = vmatmul.bf16.gmra.mxu0 %v161
    %v172 = vpop.f32.mrf.mxu0
    %v173 = vadd.f32 %v135, %v172
    %v174 = vpop.f32.mrf.mxu0
    %v175 = vadd.f32 %v135, %v174
    %176 = vdwg.mxu0
    %177 = vmatpush.bf16.msra.mxu0 0
    %178 = vmatpush.bf16.msra.mxu0 0
    %179 = vmatpush.bf16.msra.mxu0 0
    %180 = vmatpush.bf16.msra.mxu0 0
    %181 = vmatpush.bf16.msra.mxu0 0
    %182 = vmatpush.bf16.msra.mxu0 0
    %183 = vmatpush.bf16.msra.mxu0 %v154
    %184 = vmatpush.bf16.msra.mxu0 %v152
    %185 = vmatmul.bf16.gmra.mxu0 %v161
    %v186 = vpop.f32.mrf.mxu0
    %v187 = vadd.f32 %v136, %v186
    %v188 = vpop.f32.mrf.mxu0
    %v189 = vadd.f32 %v136, %v188
    %190 = vdwg.mxu0
    %v191 = vpack.c.bf16 %v187, %v173
    %v192 = vpack.c.bf16 %v189, %v175
    %vm193 = vcmask 1043456
    %vm194 = vcmask 195588
    %vm195 = vmor %vm194, %vm193
    %196 = vst.msk [vmem:[#allocation13] sm:$0xff] %vm195, %v191
    %197 = vst.msk [vmem:[#allocation13 + $0x8] sm:$0xff] %vm195, %v192
    %v198 = vld [vmem:[%s3] sm:$0xf]
    %v199 = vld [vmem:[%s3 + $0x4] sm:$0xf]
    %v200 = vld [vmem:[%s3 + $0x8] sm:$0xf]
    %v201 = vld [vmem:[%s3 + $0xc] sm:$0xf]
    %v202 = vld [vmem:[#allocation8] sm:$0x1]
    %v204 = vperm.slane %v202, 0
    %v210 = vunpack.c.l.b16 %v198
    %v211 = vunpack.c.l.b16 %v199
    %v212 = vunpack.c.l.b16 %v200
    %v213 = vunpack.c.l.b16 %v201
    %v214 = vpack.c.b16 %v211, %v210
    %v215 = vpack.c.b16 %v213, %v212
    %218 = vmatpush.bf16.msra.mxu0 0
    %219 = vmatpush.bf16.msra.mxu0 0
    %220 = vmatpush.bf16.msra.mxu0 0
    %221 = vmatpush.bf16.msra.mxu0 0
    %222 = vmatpush.bf16.msra.mxu0 0
    %223 = vmatpush.bf16.msra.mxu0 0
    %224 = vmatpush.bf16.msra.mxu0 %v215
    %225 = vmatpush.bf16.msra.mxu0 %v214
    %226 = vmatmul.bf16.gmra.mxu0 %v161
    %v227 = vpop.f32.mrf.mxu0
    %v228 = vadd.f32 %v204, %v227
    %v229 = vpop.f32.mrf.mxu0
    %v230 = vadd.f32 %v204, %v229
    %231 = vdwg.mxu0
    %vm232 = vcmp.gt.f32.partialorder %v228, 20.0
    %vm233 = vcmp.gt.f32.partialorder %v230, 20.0
    %v234 = vmin.f32 %v228, 20.0
    %v235 = vmin.f32 %v230, 20.0
    %v236 = vmul.f32 %v234, 1.442695
    %v237 = vpow.pop %v236
    %v238 = vmul.f32 %v235, 1.442695
    %v239 = vpow.pop %v238
    %v240 = vadd.f32 %v237, 1.0
    %v241 = vadd.f32 %v239, 1.0
    %v242 = vlog2.pop %v240
    %v243 = vmul.f32 %v242, 0.6931472
    %v244 = vlog2.pop %v241
    %v245 = vmul.f32 %v244, 0.6931472
    %v246 = vsel %vm232, %v228, %v243
    %v247 = vsel %vm233, %v230, %v245
    %v248 = vld [vmem:[%s5] sm:$0xff]
    %v249 = vld [vmem:[%s5 + $0x8] sm:$0xff]
    %v250 = vld [vmem:[%s5 + $0x10] sm:$0xff]
    %v251 = vld [vmem:[%s5 + $0x18] sm:$0xff]
    %v252 = vld [vmem:[#allocation10] sm:$0x3]
    %v254 = vperm.slane %v252, 0
    %v255 = vperm.slane %v252, 1
    %v262 = vunpack.c.l.b16 %v248
    %v263 = vunpack.c.h.b16 %v248
    %v264 = vunpack.c.l.b16 %v249
    %v265 = vunpack.c.h.b16 %v249
    %v266 = vunpack.c.l.b16 %v250
    %v267 = vunpack.c.h.b16 %v250
    %v268 = vunpack.c.l.b16 %v251
    %v269 = vunpack.c.h.b16 %v251
    %v270 = vpack.c.b16 %v264, %v262
    %v271 = vpack.c.b16 %v265, %v263
    %v272 = vpack.c.b16 %v268, %v266
    %v273 = vpack.c.b16 %v269, %v267
    %278 = vmatpush.bf16.msra.mxu0 0
    %279 = vmatpush.bf16.msra.mxu0 0
    %280 = vmatpush.bf16.msra.mxu0 0
    %281 = vmatpush.bf16.msra.mxu0 0
    %282 = vmatpush.bf16.msra.mxu0 0
    %283 = vmatpush.bf16.msra.mxu0 0
    %284 = vmatpush.bf16.msra.mxu0 %v272
    %285 = vmatpush.bf16.msra.mxu0 %v270
    %286 = vmatmul.bf16.gmra.mxu0 %v161
    %v287 = vpop.f32.mrf.mxu0
    %v288 = vadd.f32 %v254, %v287
    %v289 = vpop.f32.mrf.mxu0
    %v290 = vadd.f32 %v254, %v289
    %291 = vdwg.mxu0
    %292 = vmatpush.bf16.msra.mxu0 0
    %293 = vmatpush.bf16.msra.mxu0 0
    %294 = vmatpush.bf16.msra.mxu0 0
    %295 = vmatpush.bf16.msra.mxu0 0
    %296 = vmatpush.bf16.msra.mxu0 0
    %297 = vmatpush.bf16.msra.mxu0 0
    %298 = vmatpush.bf16.msra.mxu0 %v273
    %299 = vmatpush.bf16.msra.mxu0 %v271
    %300 = vmatmul.bf16.gmra.mxu0 %v161
    %v301 = vpop.f32.mrf.mxu0
    %v302 = vadd.f32 %v255, %v301
    %v303 = vpop.f32.mrf.mxu0
    %v304 = vadd.f32 %v255, %v303
    %305 = vdwg.mxu0
    %v306 = vpack.c.bf16 %v247, %v246
    %v307 = vld [vmem:[#allocation11] sm:$0xff]
    %v308 = vld [vmem:[#allocation11 + $0x8] sm:$0xff]
    %v309 = vld [vmem:[#allocation11 + $0x10] sm:$0xff]
    %v313 = vunpack.c.l.b16 %v307
    %v314 = vunpack.c.h.b16 %v307
    %v315 = vunpack.c.l.b16 %v308
    %v316 = vunpack.c.h.b16 %v308
    %v317 = vunpack.c.l.b16 %v309
    %v318 = vunpack.c.h.b16 %v309
    %v319 = vpack.c.b16 %v315, %v313
    %v320 = vpack.c.b16 %v316, %v314
    %v321 = vpack.c.b16 %v317, %v317
    %v322 = vpack.c.b16 %v318, %v318
    %vm325 = vcmask 195584
    %v327 = vsel %vm325, %v306, 0
    %v330 = vsel %vm193, %v321, 0
    %v333 = vsel %vm193, %v322, 0
    %335 = vmatpush.bf16.msra.mxu0 0
    %336 = vmatpush.bf16.msra.mxu0 0
    %337 = vmatpush.bf16.msra.mxu0 0
    %338 = vmatpush.bf16.msra.mxu0 0
    %339 = vmatpush.bf16.msra.mxu0 0
    %340 = vmatpush.bf16.msra.mxu0 0
    %341 = vmatpush.bf16.msra.mxu0 %v330
    %342 = vmatpush.bf16.msra.mxu0 %v319
    %343 = vmatmul.bf16.gmra.mxu0 %v327
    %v344 = vpop.f32.mrf.mxu0
    %v345 = vadd.f32 0.0, %v344
    %v346 = vpop.f32.mrf.mxu0
    %v347 = vadd.f32 0.0, %v346
    %348 = vdwg.mxu0
    %349 = vmatpush.bf16.msra.mxu0 0
    %350 = vmatpush.bf16.msra.mxu0 0
    %351 = vmatpush.bf16.msra.mxu0 0
    %352 = vmatpush.bf16.msra.mxu0 0
    %353 = vmatpush.bf16.msra.mxu0 0
    %354 = vmatpush.bf16.msra.mxu0 0
    %355 = vmatpush.bf16.msra.mxu0 %v333
    %356 = vmatpush.bf16.msra.mxu0 %v320
    %357 = vmatmul.bf16.gmra.mxu0 %v327
    %v358 = vpop.f32.mrf.mxu0
    %v359 = vadd.f32 0.0, %v358
    %v360 = vpop.f32.mrf.mxu0
    %v361 = vadd.f32 0.0, %v360
    %362 = vdwg.mxu0
    %v363 = vadd.f32 %v288, %v345
    %v364 = vadd.f32 %v302, %v359
    %v365 = vadd.f32 %v290, %v347
    %v366 = vadd.f32 %v304, %v361
    %v367 = vpack.c.bf16 %v364, %v363
    %v368 = vpack.c.bf16 %v366, %v365
    %vm369 = vcmask 523268
    %vm370 = vmor %vm369, %vm193
    %371 = vst.msk [vmem:[#allocation14] sm:$0xff] %vm370, %v367
    %372 = vst.msk [vmem:[#allocation14 + $0x8] sm:$0xff] %vm370, %v368
    // Predicated region
    $region58: #{tpu_custom_call.1} parent=1 // pred_check
      _
    $region59: #{tpu_custom_call.1} parent=1 // pred_check_branch
      %374 = sbr.rel (0) target = $region61
    $region60: #{tpu_custom_call.1} parent=1 // pred_region
      %376 = vsyncadd [#allocation4], 0
      %s377 = sshll.u32 [#allocation13], 4
      %s378 = int_to_ptr.vmem [resolvable:$true] %s377
      %s379 = sshll.u32 %s8, 4
      %s380 = int_to_ptr.hbm [resolvable:$true] %s379
      %385 = dma.vmem_to_hbm [thread:$0]  %s378, 256, %s380, [#allocation4], 128, 128, 8
    $region61: #{tpu_custom_call.1} parent=1 // pred_fallthru
      _
    // Predicated region
    $region62: #{tpu_custom_call.1} parent=1 // pred_check
      _
    $region63: #{tpu_custom_call.1} parent=1 // pred_check_branch
      %387 = sbr.rel (0) target = $region65
    $region64: #{tpu_custom_call.1} parent=1 // pred_region
      %389 = vsyncadd [#allocation15], 0
      %s390 = sshll.u32 [#allocation14], 4
      %s391 = int_to_ptr.vmem [resolvable:$true] %s390
      %s392 = sshll.u32 %s9, 4
      %s393 = int_to_ptr.hbm [resolvable:$true] %s392
      %398 = dma.vmem_to_hbm [thread:$0]  %s391, 256, %s393, [#allocation15], 128, 128, 8
    $region65: #{tpu_custom_call.1} parent=1 // pred_fallthru
      _
    // Predicated region
    $region66: #{tpu_custom_call.1} parent=1 // pred_check
      _
    $region67: #{tpu_custom_call.1} parent=1 // pred_check_branch
      %400 = sbr.rel (0) target = $region69
    $region68: #{tpu_custom_call.1} parent=1 // pred_region
      %402 = dma.done [#allocation4], 256
    $region69: #{tpu_custom_call.1} parent=1 // pred_fallthru
      _
    // Predicated region
    $region70: #{tpu_custom_call.1} parent=1 // pred_check
      _
    $region71: #{tpu_custom_call.1} parent=1 // pred_check_branch
      %404 = sbr.rel (0) target = $region73
    $region72: #{tpu_custom_call.1} parent=1 // pred_region
      %406 = dma.done [#allocation15], 256
    $region73: #{tpu_custom_call.1} parent=1 // pred_fallthru
      _
    %407 = vsyncpa [#allocation3], 1
    %408 = vsyncpa [#allocation6], 1
    %409 = vsyncpa [#allocation9], 1
    %410 = vsyncpa [#allocation12], 1
    %411 = vsyncpa [#allocation4], 1
    %412 = vsyncpa [#allocation15], 1

</llo_original>
